<compile_context>
chip_gen: v7x
topology: tpu7x:2x2x1
jax: 0.10.0
libtpu: 0.0.40
codegen_flags: <defaults>
</compile_context>

<pallas_src>
import jax
import jax.numpy as jnp
from jax.experimental import pallas as pl
from jax.experimental.pallas import tpu as pltpu


def _round_up(x, m):
    return (x + m - 1) // m * m


def _choose_batch_tile(batch, block_b):
    """Batch tile: multiple of 8, capped at block_b, and chosen so that any
    batch >= 16 produces at least 2 grid steps (v7x megacore sharding)."""
    half = _round_up(max(batch, 1), 16) // 2   # multiple of 8, ~ceil(B/2)
    return max(8, min(_round_up(block_b, 8), half))


def qfunction_kernel(obs_ref, act_ref, w1o_ref, w1a_ref, w2_ref, aux_ref, out_ref):
    # aux rows: 0 -> b1, 1 -> b2, 2 -> w3 (as a row), 3 -> [b3, 0, ...].  f32.
    aux = aux_ref[...]
    b1 = aux[0:1, :]
    b2 = aux[1:2, :]
    w3_row = aux[2:3, :]
    b3 = aux[3:4, 0:1]                                       # (1, 1)

    # Layer 1: split matmul over the obs / action halves of W1 (avoids any
    # concat or padded activation copy in HBM).  bf16 operands, f32 accum.
    h1 = (jnp.dot(obs_ref[...].astype(jnp.bfloat16), w1o_ref[...],
                  preferred_element_type=jnp.float32)
          + jnp.dot(act_ref[...].astype(jnp.bfloat16), w1a_ref[...],
                    preferred_element_type=jnp.float32)
          + b1)
    h1 = jnp.maximum(h1, 0.0)

    # Layer 2.
    h2 = jnp.dot(h1.astype(jnp.bfloat16), w2_ref[...],
                 preferred_element_type=jnp.float32) + b2
    h2 = jnp.maximum(h2, 0.0)

    # Layer 3 (H -> 1) as a trans-B dot: (1, H) . (TB, H)^T -> (1, TB).
    # Produces a lane-dense row so the store is unmasked and the writeback
    # DMA is one contiguous slab per grid step.
    q_row = jax.lax.dot_general(
        w3_row, h2,
        dimension_numbers=(((1,), (1,)), ((), ())),
        preferred_element_type=jnp.float32) + b3             # (1, TB)
    out_ref[0] = q_row.astype(out_ref.dtype)                 # block (1, 1, TB)


def qfunction_forward(obs, action, params, *, block_b=1024):
    """obs: (B, obs_dim + robot_goal_state_dim), action: (B, action_dim) -> (B, 1)."""
    assert obs.shape[0] == action.shape[0]
    B = obs.shape[0]
    w1, b1, w2, b2, w3, b3 = params
    d_obs = obs.shape[1]
    d_act = action.shape[1]
    d_in = d_obs + d_act
    assert w1.shape[0] == d_in, (
        "W1 rows must equal obs_dim + robot_goal_state_dim + action_dim")
    H = w1.shape[1]
    assert w2.shape == (H, H) and w3.shape == (H, 1) and b3.shape == (1,)

    TB = _choose_batch_tile(B, block_b)
    num_blocks = pl.cdiv(B, TB)          # partial last block handled by Pallas

    # MXU operands in bf16; W1 split into its obs / action row blocks.
    w1o = w1[:d_obs].astype(jnp.bfloat16)                    # (d_obs, H)
    w1a = w1[d_obs:].astype(jnp.bfloat16)                    # (d_act, H)
    w2b = w2.astype(jnp.bfloat16)
    # b1 / b2 / w3-row / b3 packed into one resident (4, H) f32 table.
    b3_row = jnp.zeros((H,), jnp.float32).at[0].set(b3[0].astype(jnp.float32))
    aux = jnp.stack([b1.astype(jnp.float32),
                     b2.astype(jnp.float32),
                     w3[:, 0].astype(jnp.float32),
                     b3_row], axis=0)                        # (4, H)

    compiler_kwargs = {"dimension_semantics": ("parallel",)}
    if TB > 4096:
        # v5e scoped-VMEM default is 16 MiB; very large tiles need a bump
        # (64 MiB is within physical VMEM on v5e/v6e/v7x).
        compiler_kwargs["vmem_limit_bytes"] = 64 * 1024 * 1024

    out = pl.pallas_call(
        qfunction_kernel,
        out_shape=jax.ShapeDtypeStruct((num_blocks, 1, TB), jnp.float32),
        grid=(num_blocks,),
        in_specs=[
            # Streaming activations (f32 in HBM, cast to bf16 in-kernel).
            # If xprof ever shows exposed activation DMA at very large TB, add
            # pipeline_mode=pl.Buffered(3) on these two specs only.
            pl.BlockSpec((TB, d_obs), lambda i: (i, 0)),
            pl.BlockSpec((TB, d_act), lambda i: (i, 0)),
            # Resident weights / packed bias table (constant index_map).
            pl.BlockSpec((d_obs, H), lambda i: (0, 0)),
            pl.BlockSpec((d_act, H), lambda i: (0, 0)),
            pl.BlockSpec((H, H), lambda i: (0, 0)),
            pl.BlockSpec((4, H), lambda i: (0, 0)),
        ],
        out_specs=pl.BlockSpec((1, 1, TB), lambda i: (i, 0, 0)),
        compiler_params=pltpu.CompilerParams(**compiler_kwargs),
    )(obs, action, w1o, w1a, w2b, aux)

    return out.reshape(-1, 1)[:B]


def init_linear(key, fan_in, fan_out):
    """torch.nn.Linear default init (uniform +/- 1/sqrt(fan_in)); W stored (in, out)."""
    kw, kb = jax.random.split(key)
    bound = 1.0 / jnp.sqrt(jnp.float32(fan_in))
    w = jax.random.uniform(kw, (fan_in, fan_out), jnp.float32, -bound, bound)
    b = jax.random.uniform(kb, (fan_out,), jnp.float32, -bound, bound)
    return w, b


def reference_forward_f32(obs, action, params):
    """Pure f32 math, identical to the PyTorch module."""
    w1, b1, w2, b2, w3, b3 = params
    x = jnp.concatenate([obs, action], axis=1)
    h = jnp.maximum(x @ w1 + b1, 0.0)
    h = jnp.maximum(h @ w2 + b2, 0.0)
    return h @ w3 + b3


def reference_forward_kernel_math(obs, action, params):
    """Same numerics as the kernel: split-W1 bf16 MXU dots, f32 accum, f32 tail."""
    w1, b1, w2, b2, w3, b3 = params
    d_obs = obs.shape[1]
    h1 = (jnp.dot(obs.astype(jnp.bfloat16), w1[:d_obs].astype(jnp.bfloat16),
                  preferred_element_type=jnp.float32)
          + jnp.dot(action.astype(jnp.bfloat16), w1[d_obs:].astype(jnp.bfloat16),
                    preferred_element_type=jnp.float32)
          + b1)
    h1 = jnp.maximum(h1, 0.0)
    h2 = jnp.dot(h1.astype(jnp.bfloat16), w2.astype(jnp.bfloat16),
                 preferred_element_type=jnp.float32) + b2
    h2 = jnp.maximum(h2, 0.0)
    return h2 @ w3 + b3


if __name__ == "__main__":
    # Small shapes consistent with the module; batch=32 gives a 2-step grid.
    batch = 32
    obs_dim = 32
    robot_goal_state_dim = 8
    action_dim = 4
    hidden_dim = 32
    in_dim = obs_dim + robot_goal_state_dim + action_dim

    key = jax.random.PRNGKey(0)
    k_obs, k_act, k1, k2, k3 = jax.random.split(key, 5)

    obs = jax.random.normal(k_obs, (batch, obs_dim + robot_goal_state_dim), jnp.float32)
    action = jax.random.normal(k_act, (batch, action_dim), jnp.float32)

    w1, b1 = init_linear(k1, in_dim, hidden_dim)
    w2, b2 = init_linear(k2, hidden_dim, hidden_dim)
    w3, b3 = init_linear(k3, hidden_dim, 1)
    params = (w1, b1, w2, b2, w3, b3)

    q = qfunction_forward(obs, action, params)
    q = jax.block_until_ready(q)
    assert q.shape == (batch, 1)

    # Strict check vs a reference using the same bf16-operand / f32-accum math.
    q_kref = reference_forward_kernel_math(obs, action, params)
    assert jnp.allclose(q, q_kref, atol=1e-3, rtol=1e-3), "mismatch vs bf16-math reference"

    # Loose sanity check vs the pure-f32 PyTorch-equivalent math.
    q_f32 = reference_forward_f32(obs, action, params)
    assert jnp.allclose(q, q_f32, atol=5e-2, rtol=5e-2), "mismatch vs f32 reference"

    print("KERNEL_OK")
</pallas_src>

<mosaic_0001>
module attributes {stable_mosaic.version = 11 : i64} {
  func.func @qfunction_kernel(%arg0: i32, %arg1: memref<16x40xf32, #tpu.memory_space<vmem>>, %arg2: memref<16x4xf32, #tpu.memory_space<vmem>>, %arg3: memref<40x32xbf16, #tpu.memory_space<vmem>>, %arg4: memref<4x32xbf16, #tpu.memory_space<vmem>>, %arg5: memref<32x32xbf16, #tpu.memory_space<vmem>>, %arg6: memref<4x32xf32, #tpu.memory_space<vmem>>, %arg7: memref<1x1x16xf32, #tpu.memory_space<vmem>>) attributes {dimension_semantics = [#tpu.dimension_semantics<parallel>], iteration_bounds = array<i64: 2>, scalar_prefetch = 0 : i64, scratch_operands = 0 : i64, tpu.core_type = #tpu.core_type<tc>, window_params = [{transform_indices = @transform_0, window_bounds = array<i64: 16, 40>}, {transform_indices = @transform_1, window_bounds = array<i64: 16, 4>}, {pipeline_mode = #tpu.pipeline_mode<synchronous>, transform_indices = @transform_2, window_bounds = array<i64: 40, 32>}, {pipeline_mode = #tpu.pipeline_mode<synchronous>, transform_indices = @transform_3, window_bounds = array<i64: 4, 32>}, {pipeline_mode = #tpu.pipeline_mode<synchronous>, transform_indices = @transform_4, window_bounds = array<i64: 32, 32>}, {pipeline_mode = #tpu.pipeline_mode<synchronous>, transform_indices = @transform_5, window_bounds = array<i64: 4, 32>}, {transform_indices = @transform_6, window_bounds = array<i64: 1, 1, 16>}]} {
    %c0 = arith.constant 0 : index
    %c0_0 = arith.constant 0 : index
    %0 = vector.load %arg6[%c0, %c0_0] : memref<4x32xf32, #tpu.memory_space<vmem>>, vector<4x32xf32>
    %1 = vector.extract_strided_slice %0 {offsets = [0, 0], sizes = [1, 32], strides = [1, 1]} : vector<4x32xf32> to vector<1x32xf32>
    %2 = vector.extract_strided_slice %0 {offsets = [1, 0], sizes = [1, 32], strides = [1, 1]} : vector<4x32xf32> to vector<1x32xf32>
    %3 = vector.extract_strided_slice %0 {offsets = [2, 0], sizes = [1, 32], strides = [1, 1]} : vector<4x32xf32> to vector<1x32xf32>
    %4 = vector.extract_strided_slice %0 {offsets = [3, 0], sizes = [1, 1], strides = [1, 1]} : vector<4x32xf32> to vector<1x1xf32>
    %c0_1 = arith.constant 0 : index
    %c0_2 = arith.constant 0 : index
    %5 = vector.load %arg1[%c0_1, %c0_2] : memref<16x40xf32, #tpu.memory_space<vmem>>, vector<16x40xf32>
    %6 = arith.truncf %5 : vector<16x40xf32> to vector<16x40xbf16>
    %c0_3 = arith.constant 0 : index
    %c0_4 = arith.constant 0 : index
    %7 = vector.load %arg3[%c0_3, %c0_4] : memref<40x32xbf16, #tpu.memory_space<vmem>>, vector<40x32xbf16>
    %cst = arith.constant dense<0.000000e+00> : vector<16x32xf32>
    %8 = tpu.matmul %6, %7, %cst {dimension_numbers = #tpu.dot_dimension_numbers<[1], [0], [0], [1], [0, 0, 1, 1], [], []>} : vector<16x40xbf16>, vector<40x32xbf16>, vector<16x32xf32> -> vector<16x32xf32>
    %c0_5 = arith.constant 0 : index
    %c0_6 = arith.constant 0 : index
    %9 = vector.load %arg2[%c0_5, %c0_6] : memref<16x4xf32, #tpu.memory_space<vmem>>, vector<16x4xf32>
    %10 = arith.truncf %9 : vector<16x4xf32> to vector<16x4xbf16>
    %c0_7 = arith.constant 0 : index
    %c0_8 = arith.constant 0 : index
    %11 = vector.load %arg4[%c0_7, %c0_8] : memref<4x32xbf16, #tpu.memory_space<vmem>>, vector<4x32xbf16>
    %cst_9 = arith.constant dense<0.000000e+00> : vector<16x32xf32>
    %12 = tpu.matmul %10, %11, %cst_9 {dimension_numbers = #tpu.dot_dimension_numbers<[1], [0], [0], [1], [0, 0, 1, 1], [], []>} : vector<16x4xbf16>, vector<4x32xbf16>, vector<16x32xf32> -> vector<16x32xf32>
    %13 = arith.addf %8, %12 : vector<16x32xf32>
    %14 = vector.broadcast %1 : vector<1x32xf32> to vector<16x32xf32>
    %15 = arith.addf %13, %14 : vector<16x32xf32>
    %cst_10 = arith.constant 0.000000e+00 : f32
    %16 = vector.broadcast %cst_10 : f32 to vector<16x32xf32>
    %17 = arith.maximumf %15, %16 : vector<16x32xf32>
    %18 = arith.truncf %17 : vector<16x32xf32> to vector<16x32xbf16>
    %c0_11 = arith.constant 0 : index
    %c0_12 = arith.constant 0 : index
    %19 = vector.load %arg5[%c0_11, %c0_12] : memref<32x32xbf16, #tpu.memory_space<vmem>>, vector<32x32xbf16>
    %cst_13 = arith.constant dense<0.000000e+00> : vector<16x32xf32>
    %20 = tpu.matmul %18, %19, %cst_13 {dimension_numbers = #tpu.dot_dimension_numbers<[1], [0], [0], [1], [0, 0, 1, 1], [], []>} : vector<16x32xbf16>, vector<32x32xbf16>, vector<16x32xf32> -> vector<16x32xf32>
    %21 = vector.broadcast %2 : vector<1x32xf32> to vector<16x32xf32>
    %22 = arith.addf %20, %21 : vector<16x32xf32>
    %cst_14 = arith.constant 0.000000e+00 : f32
    %23 = vector.broadcast %cst_14 : f32 to vector<16x32xf32>
    %24 = arith.maximumf %22, %23 : vector<16x32xf32>
    %cst_15 = arith.constant dense<0.000000e+00> : vector<1x16xf32>
    %25 = tpu.matmul %3, %24, %cst_15 {dimension_numbers = #tpu.dot_dimension_numbers<[1], [1], [0], [0], [0, 0, 1, 0], [], []>} : vector<1x32xf32>, vector<16x32xf32>, vector<1x16xf32> -> vector<1x16xf32>
    %26 = vector.broadcast %4 : vector<1x1xf32> to vector<1x16xf32>
    %27 = arith.addf %25, %26 : vector<1x16xf32>
    %c0_16 = arith.constant 0 : index
    %c0_17 = arith.constant 0 : index
    %c0_18 = arith.constant 0 : index
    %28 = vector.load %arg7[%c0_16, %c0_17, %c0_18] : memref<1x1x16xf32, #tpu.memory_space<vmem>>, vector<1x1x16xf32>
    %29 = vector.shape_cast %28 : vector<1x1x16xf32> to vector<1x16xf32>
    %30 = vector.shape_cast %27 : vector<1x16xf32> to vector<1x1x16xf32>
    tpu.vector_store %arg7[%c0_16, %c0_17, %c0_18], %30 {strides = array<i32>} : memref<1x1x16xf32, #tpu.memory_space<vmem>>, vector<1x1x16xf32>,
    return
  }
  func.func @transform_0(%arg0: i32) -> (i32, i32) {
    %c0_i32 = arith.constant 0 : i32
    %c0_i32_0 = arith.constant 0 : i32
    return %arg0, %c0_i32 : i32, i32
  }
  func.func @transform_1(%arg0: i32) -> (i32, i32) {
    %c0_i32 = arith.constant 0 : i32
    %c0_i32_0 = arith.constant 0 : i32
    return %arg0, %c0_i32 : i32, i32
  }
  func.func @transform_2(%arg0: i32) -> (i32, i32) {
    %c0_i32 = arith.constant 0 : i32
    %c0_i32_0 = arith.constant 0 : i32
    %c0_i32_1 = arith.constant 0 : i32
    return %c0_i32, %c0_i32_0 : i32, i32
  }
  func.func @transform_3(%arg0: i32) -> (i32, i32) {
    %c0_i32 = arith.constant 0 : i32
    %c0_i32_0 = arith.constant 0 : i32
    %c0_i32_1 = arith.constant 0 : i32
    return %c0_i32, %c0_i32_0 : i32, i32
  }
  func.func @transform_4(%arg0: i32) -> (i32, i32) {
    %c0_i32 = arith.constant 0 : i32
    %c0_i32_0 = arith.constant 0 : i32
    %c0_i32_1 = arith.constant 0 : i32
    return %c0_i32, %c0_i32_0 : i32, i32
  }
  func.func @transform_5(%arg0: i32) -> (i32, i32) {
    %c0_i32 = arith.constant 0 : i32
    %c0_i32_0 = arith.constant 0 : i32
    %c0_i32_1 = arith.constant 0 : i32
    return %c0_i32, %c0_i32_0 : i32, i32
  }
  func.func @transform_6(%arg0: i32) -> (i32, i32, i32) {
    %c0_i32 = arith.constant 0 : i32
    %c0_i32_0 = arith.constant 0 : i32
    %c0_i32_1 = arith.constant 0 : i32
    return %arg0, %c0_i32, %c0_i32_0 : i32, i32, i32
  }
}

</mosaic_0001>

<llo_original>
// kernel: tpu_custom_call.1
$region0: #{tpu_custom_call.1}
  #allocation0 [shape = 'u32[]', space=smem, size = 0x4, offset = 0x4, fixed_abs, tag = 'smem constant byte address 0x4 - core index']
  #allocation1 [shape = 'u32[144,128]{1,0:T(1,128)}', space=vmem, size = 0x12000, scoped, tag = 'internal scratch']
  %s0 = inlined_call_operand.vmem [shape: f32[32,40], index: 0, kind: input, shape index: {}]
  %s1 = inlined_call_operand.vmem [shape: f32[32,4], index: 1, kind: input, shape index: {}]
  %s2 = inlined_call_operand.vmem [shape: bf16[40,32], index: 2, kind: input, shape index: {}]
  %s3 = inlined_call_operand.vmem [shape: bf16[4,32], index: 3, kind: input, shape index: {}]
  %s4 = inlined_call_operand.vmem [shape: bf16[32,32], index: 4, kind: input, shape index: {}]
  %s5 = inlined_call_operand.vmem [shape: f32[4,32], index: 5, kind: input, shape index: {}]
  %s6 = inlined_call_operand.hbm [shape: f32[2,1,16], index: 6, kind: output, shape index: {}]
  %s7 = sld [smem:[#allocation0]]
  $region57: #{tpu_custom_call.1} parent=0
    _
  %s9 = ssub.s32 1, %s7
  %s10 = scalar_select 0, %s9, %s7
  $region1: #{tpu_custom_call.1} parent=0
    #allocation2 [shape = 'u8[1024]{0}', space=vmem, size = 0x400, scoped, tag = 'output window, operand 0']
    #allocation3 [shape = 's32[2]{0}', space=sflag, size = 0x8, scoped, tag = 'scoped memory for tpu_custom_call.1']
    %11 = vsyncpa [#allocation3], 0
    %s12 = scalar_lea.sflag [#allocation3], 1
    %13 = vsyncpa %s12, 0
    loop: start=0, step=1, limit=4
    $region2: #{tpu_custom_call.1} parent=1 // loop_pre_header
      _
    $region3: #{tpu_custom_call.1} parent=1 // loop_header
      %s15 = sphi 0, %s19
      %p16 = scmp.ge.s32.totalorder %s15, 4
      %s25 = sphi 0, %s27
      %s28 = sphi 0, %s25
      %s29 = sphi 0, %s28
      %s45 = sphi 0, %s29
      %s51 = sphi 0, %s53
      %s54 = sphi 0, %s51
      %s55 = sphi 0, %s54
      %s71 = sphi 0, %s55
      %s75 = sphi 0, %s75
      %s77 = sphi 0, %s75
      %s78 = sphi 0, %s77
      %s92 = sphi 0, %s78
      %s96 = sphi 0, %s96
      %s98 = sphi 0, %s96
      %s99 = sphi 0, %s98
      %s113 = sphi 0, %s99
      %s117 = sphi 0, %s117
      %s119 = sphi 0, %s117
      %s120 = sphi 0, %s119
      %s134 = sphi 0, %s120
      %s138 = sphi 0, %s138
      %s140 = sphi 0, %s138
      %s141 = sphi 0, %s140
      %s155 = sphi 0, %s141
      %s161 = sphi 0, %s163
      %s164 = sphi 0, %s161
      %s165 = sphi 0, %s164
      %s181 = sphi 0, %s165
    $region4: #{tpu_custom_call.1} parent=1 // loop_header_branch
      %18 = sbr.rel (%p16) target = $region8
    $region5: #{tpu_custom_call.1} parent=1 // loop_body
      %s20 = ssub.s32 %s15, 1
      %s21 = ssub.s32 %s15, 2
      %s22 = sadd.s32 %s15, 1
      %s23 = ssub.s32 %s15, %s22
      %p24 = scmp.eq.s32.totalorder %s23, 0
      %s26 = sadd.s32 %s25, 1
      %s27 = scalar_select %p24, %s25, %s26
      %p30 = pneg %p24
      %p31 = scmp.eq.s32.totalorder %s15, 1
      %p32 = por %p30, %p31
      %p33 = scmp.ne.s32.totalorder %s25, %s28
      %p34 = scmp.eq.s32.totalorder %s15, 0
      %p35 = por %p33, %p34
      %p36 = scmp.ne.s32.totalorder %s25, %s28
      %p37 = scmp.eq.s32.totalorder %s20, 1
      %p38 = por %p36, %p37
      %p39 = scmp.ne.s32.totalorder %s28, %s29
      %p40 = scmp.eq.s32.totalorder %s20, 0
      %p41 = por %p39, %p40
      %p42 = scmp.ne.s32.totalorder %s28, %s29
      %p43 = scmp.eq.s32.totalorder %s21, 1
      %p44 = por %p42, %p43
      %p46 = scmp.ne.s32.totalorder %s29, %s45
      %p47 = scmp.eq.s32.totalorder %s21, 0
      %p48 = por %p46, %p47
      %s49 = ssub.s32 %s15, %s22
      %p50 = scmp.eq.s32.totalorder %s49, 0
      %s52 = sadd.s32 %s51, 1
      %s53 = scalar_select %p50, %s51, %s52
      %p56 = pneg %p50
      %p57 = scmp.eq.s32.totalorder %s15, 1
      %p58 = por %p56, %p57
      %p59 = scmp.ne.s32.totalorder %s51, %s54
      %p60 = scmp.eq.s32.totalorder %s15, 0
      %p61 = por %p59, %p60
      %p62 = scmp.ne.s32.totalorder %s51, %s54
      %p63 = scmp.eq.s32.totalorder %s20, 1
      %p64 = por %p62, %p63
      %p65 = scmp.ne.s32.totalorder %s54, %s55
      %p66 = scmp.eq.s32.totalorder %s20, 0
      %p67 = por %p65, %p66
      %p68 = scmp.ne.s32.totalorder %s54, %s55
      %p69 = scmp.eq.s32.totalorder %s21, 1
      %p70 = por %p68, %p69
      %p72 = scmp.ne.s32.totalorder %s55, %s71
      %p73 = scmp.eq.s32.totalorder %s21, 0
      %p74 = por %p72, %p73
      %s76 = sadd.s32 %s75, 1
      %p79 = scmp.eq.s32.totalorder %s15, 1
      %p80 = scmp.ne.s32.totalorder %s75, %s77
      %p81 = scmp.eq.s32.totalorder %s15, 0
      %p82 = por %p80, %p81
      %p83 = scmp.ne.s32.totalorder %s75, %s77
      %p84 = scmp.eq.s32.totalorder %s20, 1
      %p85 = por %p83, %p84
      %p86 = scmp.ne.s32.totalorder %s77, %s78
      %p87 = scmp.eq.s32.totalorder %s20, 0
      %p88 = por %p86, %p87
      %p89 = scmp.ne.s32.totalorder %s77, %s78
      %p90 = scmp.eq.s32.totalorder %s21, 1
      %p91 = por %p89, %p90
      %p93 = scmp.ne.s32.totalorder %s78, %s92
      %p94 = scmp.eq.s32.totalorder %s21, 0
      %p95 = por %p93, %p94
      %s97 = sadd.s32 %s96, 1
      %p100 = scmp.eq.s32.totalorder %s15, 1
      %p101 = scmp.ne.s32.totalorder %s96, %s98
      %p102 = scmp.eq.s32.totalorder %s15, 0
      %p103 = por %p101, %p102
      %p104 = scmp.ne.s32.totalorder %s96, %s98
      %p105 = scmp.eq.s32.totalorder %s20, 1
      %p106 = por %p104, %p105
      %p107 = scmp.ne.s32.totalorder %s98, %s99
      %p108 = scmp.eq.s32.totalorder %s20, 0
      %p109 = por %p107, %p108
      %p110 = scmp.ne.s32.totalorder %s98, %s99
      %p111 = scmp.eq.s32.totalorder %s21, 1
      %p112 = por %p110, %p111
      %p114 = scmp.ne.s32.totalorder %s99, %s113
      %p115 = scmp.eq.s32.totalorder %s21, 0
      %p116 = por %p114, %p115
      %s118 = sadd.s32 %s117, 1
      %p121 = scmp.eq.s32.totalorder %s15, 1
      %p122 = scmp.ne.s32.totalorder %s117, %s119
      %p123 = scmp.eq.s32.totalorder %s15, 0
      %p124 = por %p122, %p123
      %p125 = scmp.ne.s32.totalorder %s117, %s119
      %p126 = scmp.eq.s32.totalorder %s20, 1
      %p127 = por %p125, %p126
      %p128 = scmp.ne.s32.totalorder %s119, %s120
      %p129 = scmp.eq.s32.totalorder %s20, 0
      %p130 = por %p128, %p129
      %p131 = scmp.ne.s32.totalorder %s119, %s120
      %p132 = scmp.eq.s32.totalorder %s21, 1
      %p133 = por %p131, %p132
      %p135 = scmp.ne.s32.totalorder %s120, %s134
      %p136 = scmp.eq.s32.totalorder %s21, 0
      %p137 = por %p135, %p136
      %s139 = sadd.s32 %s138, 1
      %p142 = scmp.eq.s32.totalorder %s15, 1
      %p143 = scmp.ne.s32.totalorder %s138, %s140
      %p144 = scmp.eq.s32.totalorder %s15, 0
      %p145 = por %p143, %p144
      %p146 = scmp.ne.s32.totalorder %s138, %s140
      %p147 = scmp.eq.s32.totalorder %s20, 1
      %p148 = por %p146, %p147
      %p149 = scmp.ne.s32.totalorder %s140, %s141
      %p150 = scmp.eq.s32.totalorder %s20, 0
      %p151 = por %p149, %p150
      %p152 = scmp.ne.s32.totalorder %s140, %s141
      %p153 = scmp.eq.s32.totalorder %s21, 1
      %p154 = por %p152, %p153
      %p156 = scmp.ne.s32.totalorder %s141, %s155
      %p157 = scmp.eq.s32.totalorder %s21, 0
      %p158 = por %p156, %p157
      %s159 = ssub.s32 %s15, %s22
      %p160 = scmp.eq.s32.totalorder %s159, 0
      %s162 = sadd.s32 %s161, 1
      %s163 = scalar_select %p160, %s161, %s162
      %p166 = pneg %p160
      %p167 = scmp.eq.s32.totalorder %s15, 1
      %p168 = por %p166, %p167
      %p169 = scmp.ne.s32.totalorder %s161, %s164
      %p170 = scmp.eq.s32.totalorder %s15, 0
      %p171 = por %p169, %p170
      %p172 = scmp.ne.s32.totalorder %s161, %s164
      %p173 = scmp.eq.s32.totalorder %s20, 1
      %p174 = por %p172, %p173
      %p175 = scmp.ne.s32.totalorder %s164, %s165
      %p176 = scmp.eq.s32.totalorder %s20, 0
      %p177 = por %p175, %p176
      %p178 = scmp.ne.s32.totalorder %s164, %s165
      %p179 = scmp.eq.s32.totalorder %s21, 1
      %p180 = por %p178, %p179
      %p182 = scmp.ne.s32.totalorder %s165, %s181
      %p183 = scmp.eq.s32.totalorder %s21, 0
      %p184 = por %p182, %p183
      %p185 = scmp.le.s32.totalorder 1, %s15
      %p186 = scmp.lt.s32.totalorder %s15, 3
      %p187 = pnand %p185, %p186
      %p188 = pneg %p187
      // Predicated region
      $region9: #{tpu_custom_call.1} parent=5 // pred_check
        _
      $region10: #{tpu_custom_call.1} parent=5 // pred_check_branch
        %190 = sbr.rel (%p187) target = $region12
      $region11: #{tpu_custom_call.1} parent=5 // pred_region
        %s191 = ssub.s32 %s15, 1
        // Predicated region
        $region13: #{tpu_custom_call.1} parent=11 // pred_check
          %p192 = pneg %p88
        $region14: #{tpu_custom_call.1} parent=11 // pred_check_branch
          %194 = sbr.rel (%p192) target = $region16
        $region15: #{tpu_custom_call.1} parent=11 // pred_region
          _
        $region16: #{tpu_custom_call.1} parent=11 // pred_fallthru
          _
        // Predicated region
        $region17: #{tpu_custom_call.1} parent=11 // pred_check
          %p195 = pneg %p109
        $region18: #{tpu_custom_call.1} parent=11 // pred_check_branch
          %197 = sbr.rel (%p195) target = $region20
        $region19: #{tpu_custom_call.1} parent=11 // pred_region
          _
        $region20: #{tpu_custom_call.1} parent=11 // pred_fallthru
          _
        // Predicated region
        $region21: #{tpu_custom_call.1} parent=11 // pred_check
          %p198 = pneg %p130
        $region22: #{tpu_custom_call.1} parent=11 // pred_check_branch
          %200 = sbr.rel (%p198) target = $region24
        $region23: #{tpu_custom_call.1} parent=11 // pred_region
          _
        $region24: #{tpu_custom_call.1} parent=11 // pred_fallthru
          _
        // Predicated region
        $region25: #{tpu_custom_call.1} parent=11 // pred_check
          %p201 = pneg %p151
        $region26: #{tpu_custom_call.1} parent=11 // pred_check_branch
          %203 = sbr.rel (%p201) target = $region28
        $region27: #{tpu_custom_call.1} parent=11 // pred_region
          _
        $region28: #{tpu_custom_call.1} parent=11 // pred_fallthru
          _
      $region12: #{tpu_custom_call.1} parent=5 // pred_fallthru
        _
      %p204 = scmp.lt.s32.totalorder %s15, 2
      // Predicated region
      $region29: #{tpu_custom_call.1} parent=5 // pred_check
        %p205 = pneg %p204
      $region30: #{tpu_custom_call.1} parent=5 // pred_check_branch
        %207 = sbr.rel (%p205) target = $region32
      $region31: #{tpu_custom_call.1} parent=5 // pred_region
        // Predicated region
        $region33: #{tpu_custom_call.1} parent=31 // pred_check
          %p208 = pneg %p35
        $region34: #{tpu_custom_call.1} parent=31 // pred_check_branch
          %210 = sbr.rel (%p208) target = $region36
        $region35: #{tpu_custom_call.1} parent=31 // pred_region
          %s211 = smul.u32 2, %s15
          %p212 = scmp.lt.s32.totalorder %s211, 3
          %s213 = scalar_select %p212, %s211, 3
          %s214 = smul.addr %s213, 8
          %s215 = scalar_lea.vmem %s0, %s214
          %s216 = smul.u32 2, %s15
        $region36: #{tpu_custom_call.1} parent=31 // pred_fallthru
          _
        // Predicated region
        $region37: #{tpu_custom_call.1} parent=31 // pred_check
          %p217 = pneg %p61
        $region38: #{tpu_custom_call.1} parent=31 // pred_check_branch
          %219 = sbr.rel (%p217) target = $region40
        $region39: #{tpu_custom_call.1} parent=31 // pred_region
          %s220 = smul.u32 2, %s15
          %p221 = scmp.lt.s32.totalorder %s220, 3
          %s222 = scalar_select %p221, %s220, 3
          %s223 = smul.addr %s222, 8
          %s224 = scalar_lea.vmem %s1, %s223
          %s225 = smul.u32 2, %s15
        $region40: #{tpu_custom_call.1} parent=31 // pred_fallthru
          _
      $region32: #{tpu_custom_call.1} parent=5 // pred_fallthru
        _
      %p226 = scmp.le.s32.totalorder 1, %s15
      %p227 = scmp.lt.s32.totalorder %s15, 3
      %p228 = pnand %p226, %p227
      %p229 = pneg %p228
      // Predicated region
      $region41: #{tpu_custom_call.1} parent=5 // pred_check
        _
      $region42: #{tpu_custom_call.1} parent=5 // pred_check_branch
        %231 = sbr.rel (%p228) target = $region44
      $region43: #{tpu_custom_call.1} parent=5 // pred_region
        %s232 = ssub.s32 %s15, 1
        %s233 = smul.u32 2, %s20
        %p234 = scmp.lt.s32.totalorder %s233, 3
        %s235 = scalar_select %p234, %s233, 3
        %s236 = smul.addr %s235, 8
        %s237 = scalar_lea.vmem %s0, %s236
        %p238 = pneg %p41
        %p239 = pneg %p38
        %s240 = smul.u32 2, %s20
        %p241 = scmp.lt.s32.totalorder %s240, 3
        %s242 = scalar_select %p241, %s240, 3
        %s243 = smul.addr %s242, 8
        %s244 = scalar_lea.vmem %s1, %s243
        %p245 = pneg %p67
        %p246 = pneg %p64
        %p247 = pneg %p88
        %p248 = pneg %p85
        %p249 = pneg %p109
        %p250 = pneg %p106
        %p251 = pneg %p130
        %p252 = pneg %p127
        %p253 = pneg %p151
        %p254 = pneg %p148
        %p255 = pneg %p177
        %p256 = pneg %p174
        %s257 = sand.u32 %s164, 1
        %s258 = scalar_lea.sflag [#allocation3], %s257
        %s259 = sand.u32 %s164, 1
        %s260 = scalar_lea.vmem [#allocation2], %s259
        %s261 = smul.u32 2, %s20
        %p262 = scmp.lt.s32.totalorder %s261, 3
        %s263 = scalar_select %p262, %s261, 3
        %s264 = smul.addr %s263, 8
        %s265 = scalar_lea.vmem %s0, %s264
        %s266 = smul.u32 2, %s20
        %s267 = smul.u32 2, %s20
        %p268 = scmp.lt.s32.totalorder %s267, 3
        %s269 = scalar_select %p268, %s267, 3
        %s270 = smul.addr %s269, 8
        %s271 = scalar_lea.vmem %s1, %s270
        %s272 = smul.u32 2, %s20
        %v274 = vld [vmem:[%s5] sm:$0xf]
        %v275 = vld [vmem:[%s265] sm:$0xff]
        %v276 = vld [vmem:[%s265 + $0x8] sm:$0xff]
        %v277 = vpack.c.bf16 %v276, %v275
        %v278 = vld [vmem:[%s2] sm:$0xf]
        %v279 = vld [vmem:[%s2 + $0x4] sm:$0xf]
        %v280 = vld [vmem:[%s2 + $0x8] sm:$0xf]
        %v281 = vld [vmem:[%s2 + $0xc] sm:$0xf]
        %v282 = vld [vmem:[%s2 + $0x10] sm:$0xf]
        %v283 = vld [vmem:[%s271] sm:$0xff]
        %v284 = vld [vmem:[%s271 + $0x8] sm:$0xff]
        %v285 = vpack.c.bf16 %v284, %v283
        %v286 = vld [vmem:[%s3] sm:$0x3]
        %vm287 = vcmask 31744
        %v289 = vsel %vm287, %v285, 0
        %vm291 = vcmask 1041408
        %v293 = vsel %vm291, %v286, 0
        %295 = vmatprep.subr.bf16.mxu0 0
        %296 = vmatpush1.bf16.msra.mxu0 %v293
        %297 = vmatprep.subr.bf16.mxu0 0
        %298 = vmatpush1.bf16.msra.mxu0 0
        %299 = vmatprep.subr.bf16.mxu0 0
        %300 = vmatpush1.bf16.msra.mxu0 0
        %301 = vmatprep.subr.bf16.mxu0 0
        %302 = vmatpush1.bf16.msra.mxu0 0
        %303 = vmatprep.subr.bf16.mxu0 0
        %304 = vmatpush1.bf16.msra.mxu0 0
        %305 = vmatprep.subr.bf16.mxu0 0
        %306 = vmatpush1.bf16.msra.mxu0 0
        %307 = vmatprep.subr.bf16.mxu0 0
        %308 = vmatpush1.bf16.msra.mxu0 0
        %309 = vmatprep.subr.bf16.mxu0 0
        %310 = vmatpush1.bf16.msra.mxu0 0
        %311 = vmatprep.subr.bf16.mxu0 0
        %312 = vmatpush1.bf16.msra.mxu0 0
        %313 = vmatprep.subr.bf16.mxu0 0
        %314 = vmatpush1.bf16.msra.mxu0 0
        %315 = vmatprep.subr.bf16.mxu0 0
        %316 = vmatpush1.bf16.msra.mxu0 0
        %317 = vmatprep.subr.bf16.mxu0 0
        %318 = vmatpush1.bf16.msra.mxu0 0
        %319 = vmatprep.subr.bf16.mxu0 0
        %320 = vmatpush1.bf16.msra.mxu0 0
        %321 = vmatprep.subr.bf16.mxu0 0
        %322 = vmatpush1.bf16.msra.mxu0 0
        %323 = vmatprep.subr.bf16.mxu0 0
        %324 = vmatpush1.bf16.msra.mxu0 0
        %325 = vmatprep.subr.bf16.mxu0 0
        %326 = vmatpush1.bf16.msra.mxu0 0
        %327 = vmatprep.mubr.bf16.mxu0 0
        %328 = vmatmul.mubr.bf16.gmra.mrb[0].mxu0 %v289
        %v329 = vpop.f32.mrb[0].mxu0
        %v330 = vadd.f32 0.0, %v329
        %v331 = vpop.f32.mrb[0].mxu0
        %v332 = vpop.f32.mrb[0].mxu0
        %v333 = vadd.f32 0.0, %v332
        %v334 = vpop.f32.mrb[0].mxu0
        %335 = vdwg.mxu0
        %v341 = vunpack.c.l.b16 %v278
        %v342 = vunpack.c.l.b16 %v279
        %v343 = vunpack.c.l.b16 %v280
        %v344 = vunpack.c.l.b16 %v281
        %v345 = vunpack.c.l.b16 %v282
        %v346 = vpack.c.b16 %v342, %v341
        %v347 = vpack.c.b16 %v344, %v343
        %v348 = vpack.c.b16 %v345, %v345
        %vm351 = vcmask 326656
        %v353 = vsel %vm351, %v277, 0
        %vm355 = vcmask 1043456
        %v357 = vsel %vm355, %v348, 0
        %359 = vmatprep.subr.bf16.mxu0 0
        %360 = vmatpush1.bf16.msra.mxu0 %v346
        %361 = vmatprep.subr.bf16.mxu0 0
        %362 = vmatpush1.bf16.msra.mxu0 %v347
        %363 = vmatprep.subr.bf16.mxu0 0
        %364 = vmatpush1.bf16.msra.mxu0 %v357
        %365 = vmatprep.subr.bf16.mxu0 0
        %366 = vmatpush1.bf16.msra.mxu0 0
        %367 = vmatprep.subr.bf16.mxu0 0
        %368 = vmatpush1.bf16.msra.mxu0 0
        %369 = vmatprep.subr.bf16.mxu0 0
        %370 = vmatpush1.bf16.msra.mxu0 0
        %371 = vmatprep.subr.bf16.mxu0 0
        %372 = vmatpush1.bf16.msra.mxu0 0
        %373 = vmatprep.subr.bf16.mxu0 0
        %374 = vmatpush1.bf16.msra.mxu0 0
        %375 = vmatprep.subr.bf16.mxu0 0
        %376 = vmatpush1.bf16.msra.mxu0 0
        %377 = vmatprep.subr.bf16.mxu0 0
        %378 = vmatpush1.bf16.msra.mxu0 0
        %379 = vmatprep.subr.bf16.mxu0 0
        %380 = vmatpush1.bf16.msra.mxu0 0
        %381 = vmatprep.subr.bf16.mxu0 0
        %382 = vmatpush1.bf16.msra.mxu0 0
        %383 = vmatprep.subr.bf16.mxu0 0
        %384 = vmatpush1.bf16.msra.mxu0 0
        %385 = vmatprep.subr.bf16.mxu0 0
        %386 = vmatpush1.bf16.msra.mxu0 0
        %387 = vmatprep.subr.bf16.mxu0 0
        %388 = vmatpush1.bf16.msra.mxu0 0
        %389 = vmatprep.subr.bf16.mxu0 0
        %390 = vmatpush1.bf16.msra.mxu0 0
        %391 = vmatprep.mubr.bf16.mxu0 0
        %392 = vmatmul.mubr.bf16.gmra.mrb[0].mxu0 %v353
        %v393 = vpop.f32.mrb[0].mxu0
        %v394 = vadd.f32 %v330, %v393
        %v395 = vpop.f32.mrb[0].mxu0
        %v396 = vpop.f32.mrb[0].mxu0
        %v397 = vadd.f32 %v333, %v396
        %v398 = vpop.f32.mrb[0].mxu0
        %399 = vdwg.mxu0
        %v400 = vlaneseq
        %v401 = vshrl.u32 %v400, 7
        %v402 = vsub.s32 0, %v401
        %v403 = vrot.slane %v274, %v402
        %v404 = vadd.f32 %v394, %v403
        %v405 = vadd.f32 %v397, %v403
        %v406 = vmax.f32 %v404, 0.0
        %v407 = vmax.f32 %v405, 0.0
        %v408 = vpack.c.bf16 %v407, %v406
        %v409 = vld [vmem:[%s4] sm:$0xf]
        %v410 = vld [vmem:[%s4 + $0x4] sm:$0xf]
        %v411 = vld [vmem:[%s4 + $0x8] sm:$0xf]
        %v412 = vld [vmem:[%s4 + $0xc] sm:$0xf]
        %v413 = vlaneseq
        %v414 = vshrl.u32 %v413, 7
        %v415 = vsub.s32 1, %v414
        %v416 = vrot.slane %v274, %v415
        %v421 = vunpack.c.l.b16 %v409
        %v422 = vunpack.c.l.b16 %v410
        %v423 = vunpack.c.l.b16 %v411
        %v424 = vunpack.c.l.b16 %v412
        %v425 = vpack.c.b16 %v422, %v421
        %v426 = vpack.c.b16 %v424, %v423
        %vm429 = vcmask 261120
        %v431 = vsel %vm429, %v408, 0
        %433 = vmatprep.subr.bf16.mxu0 0
        %434 = vmatpush1.bf16.msra.mxu0 %v425
        %435 = vmatprep.subr.bf16.mxu0 0
        %436 = vmatpush1.bf16.msra.mxu0 %v426
        %437 = vmatprep.subr.bf16.mxu0 0
        %438 = vmatpush1.bf16.msra.mxu0 0
        %439 = vmatprep.subr.bf16.mxu0 0
        %440 = vmatpush1.bf16.msra.mxu0 0
        %441 = vmatprep.subr.bf16.mxu0 0
        %442 = vmatpush1.bf16.msra.mxu0 0
        %443 = vmatprep.subr.bf16.mxu0 0
        %444 = vmatpush1.bf16.msra.mxu0 0
        %445 = vmatprep.subr.bf16.mxu0 0
        %446 = vmatpush1.bf16.msra.mxu0 0
        %447 = vmatprep.subr.bf16.mxu0 0
        %448 = vmatpush1.bf16.msra.mxu0 0
        %449 = vmatprep.subr.bf16.mxu0 0
        %450 = vmatpush1.bf16.msra.mxu0 0
        %451 = vmatprep.subr.bf16.mxu0 0
        %452 = vmatpush1.bf16.msra.mxu0 0
        %453 = vmatprep.subr.bf16.mxu0 0
        %454 = vmatpush1.bf16.msra.mxu0 0
        %455 = vmatprep.subr.bf16.mxu0 0
        %456 = vmatpush1.bf16.msra.mxu0 0
        %457 = vmatprep.subr.bf16.mxu0 0
        %458 = vmatpush1.bf16.msra.mxu0 0
        %459 = vmatprep.subr.bf16.mxu0 0
        %460 = vmatpush1.bf16.msra.mxu0 0
        %461 = vmatprep.subr.bf16.mxu0 0
        %462 = vmatpush1.bf16.msra.mxu0 0
        %463 = vmatprep.subr.bf16.mxu0 0
        %464 = vmatpush1.bf16.msra.mxu0 0
        %465 = vmatprep.mubr.bf16.mxu0 0
        %466 = vmatmul.mubr.bf16.gmra.mrb[0].mxu0 %v431
        %v467 = vpop.f32.mrb[0].mxu0
        %v468 = vadd.f32 %v416, %v467
        %v469 = vpop.f32.mrb[0].mxu0
        %v470 = vpop.f32.mrb[0].mxu0
        %v471 = vadd.f32 %v416, %v470
        %v472 = vpop.f32.mrb[0].mxu0
        %473 = vdwg.mxu0
        %v474 = vmax.f32 %v468, 0.0
        %v475 = vmax.f32 %v471, 0.0
        %477 = vset.pattern.permute.xlu0 0
        %478 = vperm.xlu0 %477, %v274
        %v479 = vpop.permute.xlu0 %478
        %v480 = vrot.slane %v274, 2
        %v481 = vrot.slane %v479, 3
        %v483 = vsel %vm429, %v480, 0
        %v486 = vsel %vm429, %v474, 0
        %v489 = vsel %vm429, %v475, 0
        %491 = vmatprep.subr.mxu0 0.0
        %492 = vmatpush1.xpose.msra.mxu0 %v486
        %493 = vmatprep.subr.mxu0 0.0
        %494 = vmatpush1.xpose.msra.mxu0 %v489
        %495 = vmatprep.subr.mxu0 0.0
        %496 = vmatpush1.xpose.msra.mxu0 0.0
        %497 = vmatprep.subr.mxu0 0.0
        %498 = vmatpush1.xpose.msra.mxu0 0.0
        %499 = vmatprep.subr.mxu0 0.0
        %500 = vmatpush1.xpose.msra.mxu0 0.0
        %501 = vmatprep.subr.mxu0 0.0
        %502 = vmatpush1.xpose.msra.mxu0 0.0
        %503 = vmatprep.subr.mxu0 0.0
        %504 = vmatpush1.xpose.msra.mxu0 0.0
        %505 = vmatprep.subr.mxu0 0.0
        %506 = vmatpush1.xpose.msra.mxu0 0.0
        %507 = vmatprep.subr.mxu0 0.0
        %508 = vmatpush1.xpose.msra.mxu0 0.0
        %509 = vmatprep.subr.mxu0 0.0
        %510 = vmatpush1.xpose.msra.mxu0 0.0
        %511 = vmatprep.subr.mxu0 0.0
        %512 = vmatpush1.xpose.msra.mxu0 0.0
        %513 = vmatprep.subr.mxu0 0.0
        %514 = vmatpush1.xpose.msra.mxu0 0.0
        %515 = vmatprep.subr.mxu0 0.0
        %516 = vmatpush1.xpose.msra.mxu0 0.0
        %517 = vmatprep.subr.mxu0 0.0
        %518 = vmatpush1.xpose.msra.mxu0 0.0
        %519 = vmatprep.subr.mxu0 0.0
        %520 = vmatpush1.xpose.msra.mxu0 0.0
        %521 = vmatprep.subr.mxu0 0.0
        %522 = vmatpush1.xpose.msra.mxu0 0.0
        %523 = vmatprep.subr.mxu0 0.0
        %524 = vmatpush1.xpose.msra.mxu0 0.0
        %525 = vmatprep.subr.mxu0 0.0
        %526 = vmatpush1.xpose.msra.mxu0 0.0
        %527 = vmatprep.subr.mxu0 0.0
        %528 = vmatpush1.xpose.msra.mxu0 0.0
        %529 = vmatprep.subr.mxu0 0.0
        %530 = vmatpush1.xpose.msra.mxu0 0.0
        %531 = vmatprep.subr.mxu0 0.0
        %532 = vmatpush1.xpose.msra.mxu0 0.0
        %533 = vmatprep.subr.mxu0 0.0
        %534 = vmatpush1.xpose.msra.mxu0 0.0
        %535 = vmatprep.subr.mxu0 0.0
        %536 = vmatpush1.xpose.msra.mxu0 0.0
        %537 = vmatprep.subr.mxu0 0.0
        %538 = vmatpush1.xpose.msra.mxu0 0.0
        %539 = vmatprep.subr.mxu0 0.0
        %540 = vmatpush1.xpose.msra.mxu0 0.0
        %541 = vmatprep.subr.mxu0 0.0
        %542 = vmatpush1.xpose.msra.mxu0 0.0
        %543 = vmatprep.subr.mxu0 0.0
        %544 = vmatpush1.xpose.msra.mxu0 0.0
        %545 = vmatprep.subr.mxu0 0.0
        %546 = vmatpush1.xpose.msra.mxu0 0.0
        %547 = vmatprep.subr.mxu0 0.0
        %548 = vmatpush1.xpose.msra.mxu0 0.0
        %549 = vmatprep.subr.mxu0 0.0
        %550 = vmatpush1.xpose.msra.mxu0 0.0
        %551 = vmatprep.subr.mxu0 0.0
        %552 = vmatpush1.xpose.msra.mxu0 0.0
        %553 = vmatprep.subr.mxu0 0.0
        %554 = vmatpush1.xpose.msra.mxu0 0.0
        %555 = vmatprep.mubr.f32.mxu0 0.0
        %556 = vmatmul.mubr.f32.gmra.mrb[0].mxu0 %v483
        %v557 = vpop.f32.mrb[0].mxu0
        %v558 = vadd.f32 %v481, %v557
        %v559 = vpop.f32.mrb[0].mxu0
        %560 = vdwg.mxu0
        %vm561 = vcmask 122880
        %562 = vst.msk [vmem:[%s260] sm:$0x1] %vm561, %v558
        %s563 = sand.u32 %s164, 1
        %s564 = scalar_lea.sflag [#allocation3], %s563
        %s565 = sand.u32 %s164, 1
        %s566 = scalar_lea.vmem [#allocation2], %s565
        // Predicated region
        $region45: #{tpu_custom_call.1} parent=43 // pred_check
          %p567 = pneg %p174
        $region46: #{tpu_custom_call.1} parent=43 // pred_check_branch
          %569 = sbr.rel (%p567) target = $region48
        $region47: #{tpu_custom_call.1} parent=43 // pred_region
          %s571 = ssub.s32 16, 16
          %572 = vsyncadd %s564, %s571
          %s573 = smul.addr %s20, 16
          %s574 = scalar_lea.hbm %s6, %s573
          %s576 = sshll.u32 %s566, 4
          %s577 = int_to_ptr.vmem [resolvable:$true] %s576
          %579 = dma.vmem_to_hbm [thread:$0]  %s577, 16, %s574, %s564
        $region48: #{tpu_custom_call.1} parent=43 // pred_fallthru
          _
      $region44: #{tpu_custom_call.1} parent=5 // pred_fallthru
        _
      %p580 = scmp.le.s32.totalorder 2, %s15
      // Predicated region
      $region49: #{tpu_custom_call.1} parent=5 // pred_check
        %p581 = pneg %p580
      $region50: #{tpu_custom_call.1} parent=5 // pred_check_branch
        %583 = sbr.rel (%p581) target = $region52
      $region51: #{tpu_custom_call.1} parent=5 // pred_region
        %s584 = ssub.s32 %s15, 2
        // Predicated region
        $region53: #{tpu_custom_call.1} parent=51 // pred_check
          %p585 = pneg %p180
        $region54: #{tpu_custom_call.1} parent=51 // pred_check_branch
          %587 = sbr.rel (%p585) target = $region56
        $region55: #{tpu_custom_call.1} parent=51 // pred_region
          %s588 = sand.u32 %s165, 1
          %s589 = scalar_lea.sflag [#allocation3], %s588
          %s590 = sand.u32 %s165, 1
          %s591 = scalar_lea.vmem [#allocation2], %s590
          %592 = dma.done %s589, 16
        $region56: #{tpu_custom_call.1} parent=51 // pred_fallthru
          _
      $region52: #{tpu_custom_call.1} parent=5 // pred_fallthru
        _
    $region6: #{tpu_custom_call.1} parent=1 // loop_footer
      %s19 = sadd.s32 1, %s15
    $region7: #{tpu_custom_call.1} parent=1 // loop_footer_branch
      %14 = sbr.rel target = $region3
    $region8: #{tpu_custom_call.1} parent=1 // loop_exit
      _
    %593 = vsyncpa [#allocation3], 1
    %s594 = scalar_lea.sflag [#allocation3], 1
    %595 = vsyncpa %s594, 1

</llo_original>
